<compile_context>
chip_gen: v6e
topology: v6e:2x2x1
jax: 0.10.0
libtpu: 0.0.40
codegen_flags: <defaults>
</compile_context>

<pallas_src>
import jax
import jax.numpy as jnp
from jax.experimental import pallas as pl
from jax.experimental.pallas import tpu as pltpu


LANE = 128      # vreg lane width  -> feature-dim padding unit
TB_CAP = 1024   # max batch-tile rows per grid step


def _round_up(x, m):
    return (x + m - 1) // m * m


def _sublane_pack(dtype):
    # Min second-to-last tile dim: 8 (f32), 16 (bf16/f16), 32 (int8/fp8).
    return max(8, 32 // jnp.dtype(dtype).itemsize)


def _vmem_capacity_bytes():
    try:
        return int(pltpu.get_tpu_info().vmem_capacity_bytes)
    except Exception:
        return 64 << 20   # conservative fallback (v7x per-TensorCore VMEM)


def style_model_kernel(
    text_ref,        # (TB, Ep)  compute dtype
    content_ref,     # (TB, Cp)  compute dtype
    w_enc_ref,       # (Ep, Sp)  compute dtype   (resident)
    b_enc_ref,       # (1,  Sp)  f32             (resident)
    w_dec_s_ref,     # (Sp, Ep)  compute dtype   (resident)
    w_dec_c_ref,     # (Cp, Ep)  compute dtype   (resident)
    b_dec_ref,       # (1,  Ep)  f32             (resident)
    style_out_ref,   # (TB, Sp)  out dtype
    dec_out_ref,     # (TB, Ep)  out dtype
):
    # Encoder: style = text @ W_enc^T + b_enc  (f32 accumulation on the MXU).
    style_f32 = (
        jnp.dot(text_ref[...], w_enc_ref[...], preferred_element_type=jnp.float32)
        + b_enc_ref[...]
    )
    # TODO(synk): nn.Dropout omitted (identity, i.e. eval-mode semantics).
    style_out_ref[...] = style_f32.astype(style_out_ref.dtype)

    # Decoder on cat([style, content], 1) as a concat-free split matmul.
    decoded = (
        jnp.dot(style_f32.astype(w_dec_s_ref.dtype), w_dec_s_ref[...],
                preferred_element_type=jnp.float32)
        + jnp.dot(content_ref[...], w_dec_c_ref[...],
                  preferred_element_type=jnp.float32)
        + b_dec_ref[...]
    )
    dec_out_ref[...] = decoded.astype(dec_out_ref.dtype)


def prepare_params(params, *, compute_dtype=jnp.bfloat16, out_dtype=None):
    """One-time re-layout of PyTorch-convention Linear params into kernel layout.

    params: enc_w (S, E), enc_b (S,), dec_w (E, S+C), dec_b (E,)
    Returns padded / transposed weights (lane-dense, 128-multiple features).
    Call once at parameter-load time, NOT per forward pass.
    """
    S, E = params["enc_w"].shape
    C = params["dec_w"].shape[1] - S
    Ep, Sp, Cp = _round_up(E, LANE), _round_up(S, LANE), _round_up(C, LANE)

    def _pad(x, rows, cols, dtype):
        buf = jnp.zeros((rows, cols), dtype)
        return buf.at[: x.shape[0], : x.shape[1]].set(x.astype(dtype))

    return {
        "w_enc": _pad(params["enc_w"].T, Ep, Sp, compute_dtype),
        "b_enc": _pad(params["enc_b"][None, :], 1, Sp, jnp.float32),
        "w_dec_s": _pad(params["dec_w"][:, :S].T, Sp, Ep, compute_dtype),
        "w_dec_c": _pad(params["dec_w"][:, S:].T, Cp, Ep, compute_dtype),
        "b_dec": _pad(params["dec_b"][None, :], 1, Ep, jnp.float32),
        "out_dtype": jnp.dtype(out_dtype if out_dtype is not None else compute_dtype),
        "dims": (E, S, C),
    }


def style_model_forward(text_embeddings, content_embeddings, kparams):
    """Forward pass using kernel-layout params from prepare_params."""
    E, S, C = kparams["dims"]
    B = text_embeddings.shape[0]
    Ep, Sp = kparams["w_enc"].shape
    Cp = kparams["w_dec_c"].shape[0]
    cdt = kparams["w_enc"].dtype
    odt = kparams["out_dtype"]
    isz = jnp.dtype(cdt).itemsize
    osz = jnp.dtype(odt).itemsize
    sublane = max(_sublane_pack(cdt), _sublane_pack(odt))

    # ---- per-generation VMEM budget & adaptive batch tile -----------------
    vmem_budget = int(_vmem_capacity_bytes() * 0.85)
    weight_bytes_1buf = isz * (Ep * Sp + Sp * Ep + Cp * Ep) + 4 * (Sp + Ep)
    per_row_bytes = isz * (Ep + Cp) + osz * (Sp + Ep)
    headroom = 2 << 20
    # TODO(synk): add a K-reduction grid axis (f32 accumulator + pl.when
    # init/finalize) as a fallback when resident weights exceed ~half the
    # VMEM budget (very large E/S/C on v7x).
    vmem_for_tiles = max(vmem_budget - weight_bytes_1buf - headroom, 0)

    Bp0 = _round_up(max(B, 1), sublane)
    tb_max = min(TB_CAP, max(sublane, vmem_for_tiles // max(2 * per_row_bytes, 1)))
    tb_max = max(sublane, tb_max // sublane * sublane)
    n_tiles = pl.cdiv(Bp0, tb_max)
    if n_tiles == 1 and Bp0 >= 2 * sublane:
        n_tiles = 2   # keep both v7x TensorCores busy on the "parallel" axis
    TB = _round_up(pl.cdiv(Bp0, n_tiles), sublane)
    Bp = TB * n_tiles

    # ---- pad activations only when actually needed -------------------------
    def _fit(x, rows, cols):
        if x.shape == (rows, cols) and x.dtype == cdt:
            return x
        buf = jnp.zeros((rows, cols), cdt)
        return buf.at[: x.shape[0], : x.shape[1]].set(x.astype(cdt))

    text_p = _fit(text_embeddings, Bp, Ep)
    content_p = _fit(content_embeddings, Bp, Cp)

    grid = (Bp // TB,)

    # Scheduler hint for XLA around the custom call.
    flops = 2 * Bp * Ep * Sp + 2 * Bp * Sp * Ep + 2 * Bp * Cp * Ep
    bytes_accessed = (isz * (Bp * (Ep + Cp) + Ep * Sp + Sp * Ep + Cp * Ep)
                      + 4 * (Sp + Ep) + osz * Bp * (Sp + Ep))
    cost = pl.CostEstimate(flops=flops, transcendentals=0,
                           bytes_accessed=bytes_accessed)

    def _run(single_buffer_weights):
        n_wbufs = 1 if single_buffer_weights else 2
        resident = ({"pipeline_mode": pl.Buffered(1)}
                    if single_buffer_weights else {})
        vmem_limit = int(min(
            vmem_budget,
            max(n_wbufs * weight_bytes_1buf + 2 * TB * per_row_bytes + headroom,
                4 << 20)))
        return pl.pallas_call(
            style_model_kernel,
            out_shape=(
                jax.ShapeDtypeStruct((Bp, Sp), odt),
                jax.ShapeDtypeStruct((Bp, Ep), odt),
            ),
            grid=grid,
            in_specs=[
                pl.BlockSpec((TB, Ep), lambda i: (i, 0)),              # text tile
                pl.BlockSpec((TB, Cp), lambda i: (i, 0)),              # content tile
                pl.BlockSpec((Ep, Sp), lambda i: (0, 0), **resident),  # W_enc^T
                pl.BlockSpec((1, Sp), lambda i: (0, 0), **resident),   # b_enc
                pl.BlockSpec((Sp, Ep), lambda i: (0, 0), **resident),  # W_dec style half
                pl.BlockSpec((Cp, Ep), lambda i: (0, 0), **resident),  # W_dec content half
                pl.BlockSpec((1, Ep), lambda i: (0, 0), **resident),   # b_dec
            ],
            out_specs=(
                pl.BlockSpec((TB, Sp), lambda i: (i, 0)),
                pl.BlockSpec((TB, Ep), lambda i: (i, 0)),
            ),
            compiler_params=pltpu.CompilerParams(
                dimension_semantics=("parallel",),   # batch grid across TCs (v7x)
                vmem_limit_bytes=vmem_limit,
            ),
            cost_estimate=cost,
        )(text_p, content_p, kparams["w_enc"], kparams["b_enc"],
          kparams["w_dec_s"], kparams["w_dec_c"], kparams["b_dec"])

    try:
        # Resident weights never change across the grid: single-buffer them.
        style_p, decoded_p = _run(single_buffer_weights=True)
    except Exception:
        # Fallback for jax builds that reject pl.Buffered(1) on pallas_call.
        style_p, decoded_p = _run(single_buffer_weights=False)

    # Strip padding back to the module's logical shapes (skip if aligned).
    style = style_p if (Bp, Sp) == (B, S) else style_p[:B, :S]
    decoded = decoded_p if (Bp, Ep) == (B, E) else decoded_p[:B, :E]
    return style, decoded


def init_params(key, embedding_size, style_embedding_size, content_embedding_size):
    k1, k2, k3, k4 = jax.random.split(key, 4)
    # Deterministic synthetic parameters (PyTorch Linear shape conventions).
    enc_w = jax.random.normal(
        k1, (style_embedding_size, embedding_size), jnp.float32) * 0.1
    enc_b = jax.random.normal(k2, (style_embedding_size,), jnp.float32) * 0.1
    dec_in = style_embedding_size + content_embedding_size
    dec_w = jax.random.normal(k3, (embedding_size, dec_in), jnp.float32) * 0.1
    dec_b = jax.random.normal(k4, (embedding_size,), jnp.float32) * 0.1
    return {"enc_w": enc_w, "enc_b": enc_b, "dec_w": dec_w, "dec_b": dec_b}


if __name__ == "__main__":
    # Small config consistent with the module's forward.
    batch = 8
    embedding_size = 32
    style_embedding_size = 16
    content_embedding_size = 16

    key = jax.random.PRNGKey(0)
    k_text, k_content, k_params = jax.random.split(key, 3)

    text_embeddings = jax.random.normal(
        k_text, (batch, embedding_size), jnp.float32)
    content_embeddings = jax.random.normal(
        k_content, (batch, content_embedding_size), jnp.float32)
    params = init_params(
        k_params, embedding_size, style_embedding_size, content_embedding_size)

    # One-time weight re-layout (bf16 compute / bf16 outputs by default).
    kparams = prepare_params(params)

    style, decoded = style_model_forward(text_embeddings, content_embeddings, kparams)
    jax.block_until_ready((style, decoded))

    # Reference check in plain JAX (same math as the PyTorch module, eval mode).
    style_ref = text_embeddings @ params["enc_w"].T + params["enc_b"]
    cat = jnp.concatenate([style_ref, content_embeddings], axis=1)
    dec_ref = cat @ params["dec_w"].T + params["dec_b"]

    assert style.shape == (batch, style_embedding_size)
    assert decoded.shape == (batch, embedding_size)
    # bf16 weights/activations/outputs -> loosened tolerance vs f32 reference.
    assert jnp.allclose(style.astype(jnp.float32), style_ref,
                        atol=5e-2, rtol=5e-2), "style mismatch"
    assert jnp.allclose(decoded.astype(jnp.float32), dec_ref,
                        atol=5e-2, rtol=5e-2), "decoded mismatch"

    print("KERNEL_OK")
</pallas_src>

<mosaic_0001>
module attributes {stable_mosaic.version = 11 : i64} {
  func.func @style_model_kernel(%arg0: i32, %arg1: memref<16x128xbf16, #tpu.memory_space<vmem>>, %arg2: memref<16x128xbf16, #tpu.memory_space<vmem>>, %arg3: memref<128x128xbf16, #tpu.memory_space<vmem>>, %arg4: memref<1x128xf32, #tpu.memory_space<vmem>>, %arg5: memref<128x128xbf16, #tpu.memory_space<vmem>>, %arg6: memref<128x128xbf16, #tpu.memory_space<vmem>>, %arg7: memref<1x128xf32, #tpu.memory_space<vmem>>, %arg8: memref<16x128xbf16, #tpu.memory_space<vmem>>, %arg9: memref<16x128xbf16, #tpu.memory_space<vmem>>) attributes {dimension_semantics = [#tpu.dimension_semantics<parallel>], iteration_bounds = array<i64: 1>, scalar_prefetch = 0 : i64, scratch_operands = 0 : i64, tpu.core_type = #tpu.core_type<tc>, window_params = [{transform_indices = @transform_0, window_bounds = array<i64: 16, 128>}, {transform_indices = @transform_1, window_bounds = array<i64: 16, 128>}, {pipeline_mode = #tpu.pipeline_mode<synchronous>, transform_indices = @transform_2, window_bounds = array<i64: 128, 128>}, {pipeline_mode = #tpu.pipeline_mode<synchronous>, transform_indices = @transform_3, window_bounds = array<i64: 1, 128>}, {pipeline_mode = #tpu.pipeline_mode<synchronous>, transform_indices = @transform_4, window_bounds = array<i64: 128, 128>}, {pipeline_mode = #tpu.pipeline_mode<synchronous>, transform_indices = @transform_5, window_bounds = array<i64: 128, 128>}, {pipeline_mode = #tpu.pipeline_mode<synchronous>, transform_indices = @transform_6, window_bounds = array<i64: 1, 128>}, {transform_indices = @transform_7, window_bounds = array<i64: 16, 128>}, {transform_indices = @transform_8, window_bounds = array<i64: 16, 128>}]} {
    %c0 = arith.constant 0 : index
    %c0_0 = arith.constant 0 : index
    %0 = vector.load %arg1[%c0, %c0_0] : memref<16x128xbf16, #tpu.memory_space<vmem>>, vector<16x128xbf16>
    %c0_1 = arith.constant 0 : index
    %c0_2 = arith.constant 0 : index
    %1 = vector.load %arg3[%c0_1, %c0_2] : memref<128x128xbf16, #tpu.memory_space<vmem>>, vector<128x128xbf16>
    %cst = arith.constant dense<0.000000e+00> : vector<16x128xf32>
    %2 = tpu.matmul %0, %1, %cst {dimension_numbers = #tpu.dot_dimension_numbers<[1], [0], [0], [1], [0, 0, 1, 1], [], []>} : vector<16x128xbf16>, vector<128x128xbf16>, vector<16x128xf32> -> vector<16x128xf32>
    %c0_3 = arith.constant 0 : index
    %c0_4 = arith.constant 0 : index
    %3 = vector.load %arg4[%c0_3, %c0_4] : memref<1x128xf32, #tpu.memory_space<vmem>>, vector<1x128xf32>
    %4 = vector.broadcast %3 : vector<1x128xf32> to vector<16x128xf32>
    %5 = arith.addf %2, %4 : vector<16x128xf32>
    %6 = arith.truncf %5 : vector<16x128xf32> to vector<16x128xbf16>
    %c0_5 = arith.constant 0 : index
    %c0_6 = arith.constant 0 : index
    %7 = vector.load %arg8[%c0_5, %c0_6] : memref<16x128xbf16, #tpu.memory_space<vmem>>, vector<16x128xbf16>
    tpu.vector_store %arg8[%c0_5, %c0_6], %6 {strides = array<i32>} : memref<16x128xbf16, #tpu.memory_space<vmem>>, vector<16x128xbf16>,
    %8 = arith.truncf %5 : vector<16x128xf32> to vector<16x128xbf16>
    %c0_7 = arith.constant 0 : index
    %c0_8 = arith.constant 0 : index
    %9 = vector.load %arg5[%c0_7, %c0_8] : memref<128x128xbf16, #tpu.memory_space<vmem>>, vector<128x128xbf16>
    %cst_9 = arith.constant dense<0.000000e+00> : vector<16x128xf32>
    %10 = tpu.matmul %8, %9, %cst_9 {dimension_numbers = #tpu.dot_dimension_numbers<[1], [0], [0], [1], [0, 0, 1, 1], [], []>} : vector<16x128xbf16>, vector<128x128xbf16>, vector<16x128xf32> -> vector<16x128xf32>
    %c0_10 = arith.constant 0 : index
    %c0_11 = arith.constant 0 : index
    %11 = vector.load %arg2[%c0_10, %c0_11] : memref<16x128xbf16, #tpu.memory_space<vmem>>, vector<16x128xbf16>
    %c0_12 = arith.constant 0 : index
    %c0_13 = arith.constant 0 : index
    %12 = vector.load %arg6[%c0_12, %c0_13] : memref<128x128xbf16, #tpu.memory_space<vmem>>, vector<128x128xbf16>
    %cst_14 = arith.constant dense<0.000000e+00> : vector<16x128xf32>
    %13 = tpu.matmul %11, %12, %cst_14 {dimension_numbers = #tpu.dot_dimension_numbers<[1], [0], [0], [1], [0, 0, 1, 1], [], []>} : vector<16x128xbf16>, vector<128x128xbf16>, vector<16x128xf32> -> vector<16x128xf32>
    %14 = arith.addf %10, %13 : vector<16x128xf32>
    %c0_15 = arith.constant 0 : index
    %c0_16 = arith.constant 0 : index
    %15 = vector.load %arg7[%c0_15, %c0_16] : memref<1x128xf32, #tpu.memory_space<vmem>>, vector<1x128xf32>
    %16 = vector.broadcast %15 : vector<1x128xf32> to vector<16x128xf32>
    %17 = arith.addf %14, %16 : vector<16x128xf32>
    %18 = arith.truncf %17 : vector<16x128xf32> to vector<16x128xbf16>
    %c0_17 = arith.constant 0 : index
    %c0_18 = arith.constant 0 : index
    %19 = vector.load %arg9[%c0_17, %c0_18] : memref<16x128xbf16, #tpu.memory_space<vmem>>, vector<16x128xbf16>
    tpu.vector_store %arg9[%c0_17, %c0_18], %18 {strides = array<i32>} : memref<16x128xbf16, #tpu.memory_space<vmem>>, vector<16x128xbf16>,
    return
  }
  func.func @transform_0(%arg0: i32) -> (i32, i32) {
    %c0_i32 = arith.constant 0 : i32
    %c0_i32_0 = arith.constant 0 : i32
    return %arg0, %c0_i32 : i32, i32
  }
  func.func @transform_1(%arg0: i32) -> (i32, i32) {
    %c0_i32 = arith.constant 0 : i32
    %c0_i32_0 = arith.constant 0 : i32
    return %arg0, %c0_i32 : i32, i32
  }
  func.func @transform_2(%arg0: i32) -> (i32, i32) {
    %c0_i32 = arith.constant 0 : i32
    %c0_i32_0 = arith.constant 0 : i32
    %c0_i32_1 = arith.constant 0 : i32
    return %c0_i32, %c0_i32_0 : i32, i32
  }
  func.func @transform_3(%arg0: i32) -> (i32, i32) {
    %c0_i32 = arith.constant 0 : i32
    %c0_i32_0 = arith.constant 0 : i32
    %c0_i32_1 = arith.constant 0 : i32
    return %c0_i32, %c0_i32_0 : i32, i32
  }
  func.func @transform_4(%arg0: i32) -> (i32, i32) {
    %c0_i32 = arith.constant 0 : i32
    %c0_i32_0 = arith.constant 0 : i32
    %c0_i32_1 = arith.constant 0 : i32
    return %c0_i32, %c0_i32_0 : i32, i32
  }
  func.func @transform_5(%arg0: i32) -> (i32, i32) {
    %c0_i32 = arith.constant 0 : i32
    %c0_i32_0 = arith.constant 0 : i32
    %c0_i32_1 = arith.constant 0 : i32
    return %c0_i32, %c0_i32_0 : i32, i32
  }
  func.func @transform_6(%arg0: i32) -> (i32, i32) {
    %c0_i32 = arith.constant 0 : i32
    %c0_i32_0 = arith.constant 0 : i32
    %c0_i32_1 = arith.constant 0 : i32
    return %c0_i32, %c0_i32_0 : i32, i32
  }
  func.func @transform_7(%arg0: i32) -> (i32, i32) {
    %c0_i32 = arith.constant 0 : i32
    %c0_i32_0 = arith.constant 0 : i32
    return %arg0, %c0_i32 : i32, i32
  }
  func.func @transform_8(%arg0: i32) -> (i32, i32) {
    %c0_i32 = arith.constant 0 : i32
    %c0_i32_0 = arith.constant 0 : i32
    return %arg0, %c0_i32 : i32, i32
  }
}

module attributes {stable_mosaic.version = 11 : i64} {
  func.func @style_model_kernel(%arg0: i32, %arg1: memref<16x128xbf16, #tpu.memory_space<vmem>>, %arg2: memref<16x128xbf16, #tpu.memory_space<vmem>>, %arg3: memref<128x128xbf16, #tpu.memory_space<vmem>>, %arg4: memref<1x128xf32, #tpu.memory_space<vmem>>, %arg5: memref<128x128xbf16, #tpu.memory_space<vmem>>, %arg6: memref<128x128xbf16, #tpu.memory_space<vmem>>, %arg7: memref<1x128xf32, #tpu.memory_space<vmem>>, %arg8: memref<16x128xbf16, #tpu.memory_space<vmem>>, %arg9: memref<16x128xbf16, #tpu.memory_space<vmem>>) attributes {dimension_semantics = [#tpu.dimension_semantics<parallel>], iteration_bounds = array<i64: 1>, scalar_prefetch = 0 : i64, scratch_operands = 0 : i64, tpu.core_type = #tpu.core_type<tc>, window_params = [{transform_indices = @transform_0, window_bounds = array<i64: 16, 128>}, {transform_indices = @transform_1, window_bounds = array<i64: 16, 128>}, {pipeline_mode = #tpu.pipeline_mode<synchronous>, transform_indices = @transform_2, window_bounds = array<i64: 128, 128>}, {pipeline_mode = #tpu.pipeline_mode<synchronous>, transform_indices = @transform_3, window_bounds = array<i64: 1, 128>}, {pipeline_mode = #tpu.pipeline_mode<synchronous>, transform_indices = @transform_4, window_bounds = array<i64: 128, 128>}, {pipeline_mode = #tpu.pipeline_mode<synchronous>, transform_indices = @transform_5, window_bounds = array<i64: 128, 128>}, {pipeline_mode = #tpu.pipeline_mode<synchronous>, transform_indices = @transform_6, window_bounds = array<i64: 1, 128>}, {transform_indices = @transform_7, window_bounds = array<i64: 16, 128>}, {transform_indices = @transform_8, window_bounds = array<i64: 16, 128>}]} {
    %c0 = arith.constant 0 : index
    %c0_0 = arith.constant 0 : index
    %0 = vector.load %arg1[%c0, %c0_0] : memref<16x128xbf16, #tpu.memory_space<vmem>>, vector<16x128xbf16>
    %c0_1 = arith.constant 0 : index
    %c0_2 = arith.constant 0 : index
    %1 = vector.load %arg3[%c0_1, %c0_2] : memref<128x128xbf16, #tpu.memory_space<vmem>>, vector<128x128xbf16>
    %cst = arith.constant dense<0.000000e+00> : vector<16x128xf32>
    %2 = tpu.matmul %0, %1, %cst {dimension_numbers = #tpu.dot_dimension_numbers<[1], [0], [0], [1], [0, 0, 1, 1], [], []>} : vector<16x128xbf16>, vector<128x128xbf16>, vector<16x128xf32> -> vector<16x128xf32>
    %c0_3 = arith.constant 0 : index
    %c0_4 = arith.constant 0 : index
    %3 = vector.load %arg4[%c0_3, %c0_4] : memref<1x128xf32, #tpu.memory_space<vmem>>, vector<1x128xf32>
    %4 = vector.broadcast %3 : vector<1x128xf32> to vector<16x128xf32>
    %5 = arith.addf %2, %4 : vector<16x128xf32>
    %6 = arith.truncf %5 : vector<16x128xf32> to vector<16x128xbf16>
    %c0_5 = arith.constant 0 : index
    %c0_6 = arith.constant 0 : index
    %7 = vector.load %arg8[%c0_5, %c0_6] : memref<16x128xbf16, #tpu.memory_space<vmem>>, vector<16x128xbf16>
    tpu.vector_store %arg8[%c0_5, %c0_6], %6 {strides = array<i32>} : memref<16x128xbf16, #tpu.memory_space<vmem>>, vector<16x128xbf16>,
    %8 = arith.truncf %5 : vector<16x128xf32> to vector<16x128xbf16>
    %c0_7 = arith.constant 0 : index
    %c0_8 = arith.constant 0 : index
    %9 = vector.load %arg5[%c0_7, %c0_8] : memref<128x128xbf16, #tpu.memory_space<vmem>>, vector<128x128xbf16>
    %cst_9 = arith.constant dense<0.000000e+00> : vector<16x128xf32>
    %10 = tpu.matmul %8, %9, %cst_9 {dimension_numbers = #tpu.dot_dimension_numbers<[1], [0], [0], [1], [0, 0, 1, 1], [], []>} : vector<16x128xbf16>, vector<128x128xbf16>, vector<16x128xf32> -> vector<16x128xf32>
    %c0_10 = arith.constant 0 : index
    %c0_11 = arith.constant 0 : index
    %11 = vector.load %arg2[%c0_10, %c0_11] : memref<16x128xbf16, #tpu.memory_space<vmem>>, vector<16x128xbf16>
    %c0_12 = arith.constant 0 : index
    %c0_13 = arith.constant 0 : index
    %12 = vector.load %arg6[%c0_12, %c0_13] : memref<128x128xbf16, #tpu.memory_space<vmem>>, vector<128x128xbf16>
    %cst_14 = arith.constant dense<0.000000e+00> : vector<16x128xf32>
    %13 = tpu.matmul %11, %12, %cst_14 {dimension_numbers = #tpu.dot_dimension_numbers<[1], [0], [0], [1], [0, 0, 1, 1], [], []>} : vector<16x128xbf16>, vector<128x128xbf16>, vector<16x128xf32> -> vector<16x128xf32>
    %14 = arith.addf %10, %13 : vector<16x128xf32>
    %c0_15 = arith.constant 0 : index
    %c0_16 = arith.constant 0 : index
    %15 = vector.load %arg7[%c0_15, %c0_16] : memref<1x128xf32, #tpu.memory_space<vmem>>, vector<1x128xf32>
    %16 = vector.broadcast %15 : vector<1x128xf32> to vector<16x128xf32>
    %17 = arith.addf %14, %16 : vector<16x128xf32>
    %18 = arith.truncf %17 : vector<16x128xf32> to vector<16x128xbf16>
    %c0_17 = arith.constant 0 : index
    %c0_18 = arith.constant 0 : index
    %19 = vector.load %arg9[%c0_17, %c0_18] : memref<16x128xbf16, #tpu.memory_space<vmem>>, vector<16x128xbf16>
    tpu.vector_store %arg9[%c0_17, %c0_18], %18 {strides = array<i32>} : memref<16x128xbf16, #tpu.memory_space<vmem>>, vector<16x128xbf16>,
    return
  }
  func.func @transform_0(%arg0: i32) -> (i32, i32) {
    %c0_i32 = arith.constant 0 : i32
    %c0_i32_0 = arith.constant 0 : i32
    return %arg0, %c0_i32 : i32, i32
  }
  func.func @transform_1(%arg0: i32) -> (i32, i32) {
    %c0_i32 = arith.constant 0 : i32
    %c0_i32_0 = arith.constant 0 : i32
    return %arg0, %c0_i32 : i32, i32
  }
  func.func @transform_2(%arg0: i32) -> (i32, i32) {
    %c0_i32 = arith.constant 0 : i32
    %c0_i32_0 = arith.constant 0 : i32
    %c0_i32_1 = arith.constant 0 : i32
    return %c0_i32, %c0_i32_0 : i32, i32
  }
  func.func @transform_3(%arg0: i32) -> (i32, i32) {
    %c0_i32 = arith.constant 0 : i32
    %c0_i32_0 = arith.constant 0 : i32
    %c0_i32_1 = arith.constant 0 : i32
    return %c0_i32, %c0_i32_0 : i32, i32
  }
  func.func @transform_4(%arg0: i32) -> (i32, i32) {
    %c0_i32 = arith.constant 0 : i32
    %c0_i32_0 = arith.constant 0 : i32
    %c0_i32_1 = arith.constant 0 : i32
    return %c0_i32, %c0_i32_0 : i32, i32
  }
  func.func @transform_5(%arg0: i32) -> (i32, i32) {
    %c0_i32 = arith.constant 0 : i32
    %c0_i32_0 = arith.constant 0 : i32
    %c0_i32_1 = arith.constant 0 : i32
    return %c0_i32, %c0_i32_0 : i32, i32
  }
  func.func @transform_6(%arg0: i32) -> (i32, i32) {
    %c0_i32 = arith.constant 0 : i32
    %c0_i32_0 = arith.constant 0 : i32
    %c0_i32_1 = arith.constant 0 : i32
    return %c0_i32, %c0_i32_0 : i32, i32
  }
  func.func @transform_7(%arg0: i32) -> (i32, i32) {
    %c0_i32 = arith.constant 0 : i32
    %c0_i32_0 = arith.constant 0 : i32
    return %arg0, %c0_i32 : i32, i32
  }
  func.func @transform_8(%arg0: i32) -> (i32, i32) {
    %c0_i32 = arith.constant 0 : i32
    %c0_i32_0 = arith.constant 0 : i32
    return %arg0, %c0_i32 : i32, i32
  }
}

</mosaic_0001>

<llo_original>
// kernel: tpu_custom_call.1
$region0: #{tpu_custom_call.1}
  #allocation0 [shape = 'u32[]', space=smem, size = 0x4, offset = 0x4, fixed_abs, tag = 'smem constant byte address 0x4 - core index']
  #allocation1 [shape = 'u32[144,128]{1,0:T(1,128)}', space=vmem, size = 0x12000, scoped, tag = 'internal scratch']
  %s0 = inlined_call_operand.hbm [shape: bf16[16,128], index: 0, kind: input, shape index: {}]
  %s1 = inlined_call_operand.hbm [shape: bf16[16,128], index: 1, kind: input, shape index: {}]
  %s2 = inlined_call_operand.hbm [shape: bf16[128,128], index: 2, kind: input, shape index: {}]
  %s3 = inlined_call_operand.vmem [shape: f32[1,128], index: 3, kind: input, shape index: {}]
  %s4 = inlined_call_operand.hbm [shape: bf16[128,128], index: 4, kind: input, shape index: {}]
  %s5 = inlined_call_operand.hbm [shape: bf16[128,128], index: 5, kind: input, shape index: {}]
  %s6 = inlined_call_operand.vmem [shape: f32[1,128], index: 6, kind: input, shape index: {}]
  %s7 = inlined_call_operand.hbm [shape: bf16[16,128], index: 7, kind: output, shape index: {0}]
  %s8 = inlined_call_operand.hbm [shape: bf16[16,128], index: 8, kind: output, shape index: {1}]
  %9 = xla_tuple %s7, %s8
  %s10 = sld [smem:[#allocation0]]
  $region66: #{tpu_custom_call.1} parent=0
    _
  %s12 = ssub.s32 1, %s10
  %s13 = scalar_select 0, %s12, %s10
  $region1: #{tpu_custom_call.1} parent=0
    #allocation2 [shape = 'u8[4096]{0}', space=vmem, size = 0x1000, scoped, tag = 'input window, operand 0, single buffered']
    #allocation3 [shape = 's32[1]{0}', space=sflag, size = 0x4, scoped, tag = 'scoped memory for tpu_custom_call.1']
    #allocation4 [shape = 's32[1]{0}', space=sflag, size = 0x4, scoped, tag = 'scoped memory for tpu_custom_call.1']
    #allocation5 [shape = 'u8[4096]{0}', space=vmem, size = 0x1000, scoped, tag = 'input window, operand 1, single buffered']
    #allocation6 [shape = 's32[1]{0}', space=sflag, size = 0x4, scoped, tag = 'scoped memory for tpu_custom_call.1']
    #allocation7 [shape = 'u8[32768]{0}', space=vmem, size = 0x8000, scoped, tag = 'input window, operand 2, single buffered']
    #allocation8 [shape = 'u8[32768]{0}', space=vmem, size = 0x8000, scoped, tag = 'input window, operand 4, single buffered']
    #allocation9 [shape = 's32[1]{0}', space=sflag, size = 0x4, scoped, tag = 'scoped memory for tpu_custom_call.1']
    #allocation10 [shape = 'u8[32768]{0}', space=vmem, size = 0x8000, scoped, tag = 'input window, operand 5, single buffered']
    #allocation11 [shape = 'u8[4096]{0}', space=vmem, size = 0x1000, scoped, tag = 'output window, operand 0, single buffered']
    #allocation12 [shape = 'u8[4096]{0}', space=vmem, size = 0x1000, scoped, tag = 'output window, operand 1, single buffered']
    #allocation13 [shape = 's32[1]{0}', space=sflag, size = 0x4, scoped, tag = 'scoped memory for tpu_custom_call.1']
    %14 = vsyncpa [#allocation3], 0
    %15 = vsyncpa [#allocation6], 0
    %16 = vsyncpa [#allocation9], 0
    %17 = vsyncpa [#allocation4], 0
    %18 = vsyncpa [#allocation13], 0
    // Predicated region
    $region2: #{tpu_custom_call.1} parent=1 // pred_check
      _
    $region3: #{tpu_custom_call.1} parent=1 // pred_check_branch
      %20 = sbr.rel (0) target = $region5
    $region4: #{tpu_custom_call.1} parent=1 // pred_region
      %s22 = ssub.s32 128, 128
      %23 = vsyncadd [#allocation3], %s22
      %s24 = sshll.u32 [#allocation2], 4
      %s25 = int_to_ptr.vmem [resolvable:$true] %s24
      %30 = dma.hbm_to_vmem [thread:$0]  %s0, 128, %s25, [#allocation3], 64, 64, 4
    $region5: #{tpu_custom_call.1} parent=1 // pred_fallthru
      _
    // Predicated region
    $region6: #{tpu_custom_call.1} parent=1 // pred_check
      _
    $region7: #{tpu_custom_call.1} parent=1 // pred_check_branch
      %32 = sbr.rel (0) target = $region9
    $region8: #{tpu_custom_call.1} parent=1 // pred_region
      %s34 = ssub.s32 128, 128
      %35 = vsyncadd [#allocation6], %s34
      %s36 = sshll.u32 [#allocation5], 4
      %s37 = int_to_ptr.vmem [resolvable:$true] %s36
      %42 = dma.hbm_to_vmem [thread:$0]  %s1, 128, %s37, [#allocation6], 64, 64, 4
    $region9: #{tpu_custom_call.1} parent=1 // pred_fallthru
      _
    // Predicated region
    $region10: #{tpu_custom_call.1} parent=1 // pred_check
      _
    $region11: #{tpu_custom_call.1} parent=1 // pred_check_branch
      %44 = sbr.rel (0) target = $region13
    $region12: #{tpu_custom_call.1} parent=1 // pred_region
      %s46 = ssub.s32 1024, 1024
      %47 = vsyncadd [#allocation6], %s46
      %s48 = sshll.u32 [#allocation7], 4
      %s49 = int_to_ptr.vmem [resolvable:$true] %s48
      %54 = dma.hbm_to_vmem [thread:$0]  %s2, 1024, %s49, [#allocation6], 64, 64, 4
    $region13: #{tpu_custom_call.1} parent=1 // pred_fallthru
      _
    // Predicated region
    $region14: #{tpu_custom_call.1} parent=1 // pred_check
      _
    $region15: #{tpu_custom_call.1} parent=1 // pred_check_branch
      %56 = sbr.rel (0) target = $region17
    $region16: #{tpu_custom_call.1} parent=1 // pred_region
      _
    $region17: #{tpu_custom_call.1} parent=1 // pred_fallthru
      _
    // Predicated region
    $region18: #{tpu_custom_call.1} parent=1 // pred_check
      _
    $region19: #{tpu_custom_call.1} parent=1 // pred_check_branch
      %58 = sbr.rel (0) target = $region21
    $region20: #{tpu_custom_call.1} parent=1 // pred_region
      %s60 = ssub.s32 1024, 1024
      %61 = vsyncadd [#allocation9], %s60
      %s62 = sshll.u32 [#allocation8], 4
      %s63 = int_to_ptr.vmem [resolvable:$true] %s62
      %68 = dma.hbm_to_vmem [thread:$0]  %s4, 1024, %s63, [#allocation9], 64, 64, 4
    $region21: #{tpu_custom_call.1} parent=1 // pred_fallthru
      _
    // Predicated region
    $region22: #{tpu_custom_call.1} parent=1 // pred_check
      _
    $region23: #{tpu_custom_call.1} parent=1 // pred_check_branch
      %70 = sbr.rel (0) target = $region25
    $region24: #{tpu_custom_call.1} parent=1 // pred_region
      %s72 = ssub.s32 1024, 1024
      %73 = vsyncadd [#allocation9], %s72
      %s74 = sshll.u32 [#allocation10], 4
      %s75 = int_to_ptr.vmem [resolvable:$true] %s74
      %80 = dma.hbm_to_vmem [thread:$0]  %s5, 1024, %s75, [#allocation9], 64, 64, 4
    $region25: #{tpu_custom_call.1} parent=1 // pred_fallthru
      _
    // Predicated region
    $region26: #{tpu_custom_call.1} parent=1 // pred_check
      _
    $region27: #{tpu_custom_call.1} parent=1 // pred_check_branch
      %82 = sbr.rel (0) target = $region29
    $region28: #{tpu_custom_call.1} parent=1 // pred_region
      _
    $region29: #{tpu_custom_call.1} parent=1 // pred_fallthru
      _
    // Predicated region
    $region30: #{tpu_custom_call.1} parent=1 // pred_check
      _
    $region31: #{tpu_custom_call.1} parent=1 // pred_check_branch
      %84 = sbr.rel (0) target = $region33
    $region32: #{tpu_custom_call.1} parent=1 // pred_region
      %85 = dma.done [#allocation3], 128
    $region33: #{tpu_custom_call.1} parent=1 // pred_fallthru
      _
    // Predicated region
    $region34: #{tpu_custom_call.1} parent=1 // pred_check
      _
    $region35: #{tpu_custom_call.1} parent=1 // pred_check_branch
      %87 = sbr.rel (0) target = $region37
    $region36: #{tpu_custom_call.1} parent=1 // pred_region
      %88 = dma.done [#allocation6], 128
    $region37: #{tpu_custom_call.1} parent=1 // pred_fallthru
      _
    // Predicated region
    $region38: #{tpu_custom_call.1} parent=1 // pred_check
      _
    $region39: #{tpu_custom_call.1} parent=1 // pred_check_branch
      %90 = sbr.rel (0) target = $region41
    $region40: #{tpu_custom_call.1} parent=1 // pred_region
      %91 = dma.done [#allocation6], 1024
    $region41: #{tpu_custom_call.1} parent=1 // pred_fallthru
      _
    // Predicated region
    $region42: #{tpu_custom_call.1} parent=1 // pred_check
      _
    $region43: #{tpu_custom_call.1} parent=1 // pred_check_branch
      %93 = sbr.rel (0) target = $region45
    $region44: #{tpu_custom_call.1} parent=1 // pred_region
      %94 = dma.done [#allocation9], 1024
    $region45: #{tpu_custom_call.1} parent=1 // pred_fallthru
      _
    // Predicated region
    $region46: #{tpu_custom_call.1} parent=1 // pred_check
      _
    $region47: #{tpu_custom_call.1} parent=1 // pred_check_branch
      %96 = sbr.rel (0) target = $region49
    $region48: #{tpu_custom_call.1} parent=1 // pred_region
      %97 = dma.done [#allocation9], 1024
    $region49: #{tpu_custom_call.1} parent=1 // pred_fallthru
      _
    %v99 = vld [vmem:[#allocation2] sm:$0xf]
    %v100 = vld [vmem:[#allocation2 + $0x4] sm:$0xf]
    %v101 = vld [vmem:[#allocation7] sm:$0xf]
    %v102 = vld [vmem:[#allocation7 + $0x4] sm:$0xf]
    %v103 = vld [vmem:[#allocation7 + $0x8] sm:$0xf]
    %v104 = vld [vmem:[#allocation7 + $0xc] sm:$0xf]
    %v105 = vld [vmem:[#allocation7 + $0x10] sm:$0xf]
    %v106 = vld [vmem:[#allocation7 + $0x14] sm:$0xf]
    %v107 = vld [vmem:[#allocation7 + $0x18] sm:$0xf]
    %v108 = vld [vmem:[#allocation7 + $0x1c] sm:$0xf]
    %v109 = vld [vmem:[#allocation7 + $0x20] sm:$0xf]
    %v110 = vld [vmem:[#allocation7 + $0x24] sm:$0xf]
    %v111 = vld [vmem:[#allocation7 + $0x28] sm:$0xf]
    %v112 = vld [vmem:[#allocation7 + $0x2c] sm:$0xf]
    %v113 = vld [vmem:[#allocation7 + $0x30] sm:$0xf]
    %v114 = vld [vmem:[#allocation7 + $0x34] sm:$0xf]
    %v115 = vld [vmem:[#allocation7 + $0x38] sm:$0xf]
    %v116 = vld [vmem:[#allocation7 + $0x3c] sm:$0xf]
    %v117 = vld [vmem:[%s3] sm:$0x1]
    %v119 = vlaneseq
    %v120 = vshrl.u32 %v119, 7
    %v121 = vsub.s32 0, %v120
    %v122 = vrot.slane %v117, %v121
    %v126 = vunpack.c.l.b16 %v99
    %v127 = vunpack.c.l.b16 %v100
    %v128 = vpack.c.b16 %v127, %v126
    %v146 = vunpack.c.l.b16 %v101
    %v147 = vunpack.c.l.b16 %v102
    %v148 = vunpack.c.l.b16 %v103
    %v149 = vunpack.c.l.b16 %v104
    %v150 = vunpack.c.l.b16 %v105
    %v151 = vunpack.c.l.b16 %v106
    %v152 = vunpack.c.l.b16 %v107
    %v153 = vunpack.c.l.b16 %v108
    %v154 = vunpack.c.l.b16 %v109
    %v155 = vunpack.c.l.b16 %v110
    %v156 = vunpack.c.l.b16 %v111
    %v157 = vunpack.c.l.b16 %v112
    %v158 = vunpack.c.l.b16 %v113
    %v159 = vunpack.c.l.b16 %v114
    %v160 = vunpack.c.l.b16 %v115
    %v161 = vunpack.c.l.b16 %v116
    %v162 = vpack.c.b16 %v147, %v146
    %v163 = vpack.c.b16 %v149, %v148
    %v164 = vpack.c.b16 %v151, %v150
    %v165 = vpack.c.b16 %v153, %v152
    %v166 = vpack.c.b16 %v155, %v154
    %v167 = vpack.c.b16 %v157, %v156
    %v168 = vpack.c.b16 %v159, %v158
    %v169 = vpack.c.b16 %v161, %v160
    %178 = vmatprep.subr.bf16.mxu0 0
    %179 = vmatpush1.bf16.msra.mxu0 %v169
    %180 = vmatprep.subr.bf16.mxu0 0
    %181 = vmatpush1.bf16.msra.mxu0 %v168
    %182 = vmatprep.subr.bf16.mxu0 0
    %183 = vmatpush1.bf16.msra.mxu0 %v167
    %184 = vmatprep.subr.bf16.mxu0 0
    %185 = vmatpush1.bf16.msra.mxu0 %v166
    %186 = vmatprep.subr.bf16.mxu0 0
    %187 = vmatpush1.bf16.msra.mxu0 %v165
    %188 = vmatprep.subr.bf16.mxu0 0
    %189 = vmatpush1.bf16.msra.mxu0 %v164
    %190 = vmatprep.subr.bf16.mxu0 0
    %191 = vmatpush1.bf16.msra.mxu0 %v163
    %192 = vmatprep.subr.bf16.mxu0 0
    %193 = vmatpush1.bf16.msra.mxu0 %v162
    %194 = vmatprep.subr.bf16.mxu0 0
    %195 = vmatpush2.bf16.msra.mxu0 0
    %196 = vmatprep.subr.bf16.mxu0 0
    %197 = vmatpush2.bf16.msra.mxu0 0
    %198 = vmatprep.subr.bf16.mxu0 0
    %199 = vmatpush2.bf16.msra.mxu0 0
    %200 = vmatprep.subr.bf16.mxu0 0
    %201 = vmatpush2.bf16.msra.mxu0 0
    %202 = vmatprep.subr.bf16.mxu0 0
    %203 = vmatpush2.bf16.msra.mxu0 0
    %204 = vmatprep.subr.bf16.mxu0 0
    %205 = vmatpush2.bf16.msra.mxu0 0
    %206 = vmatprep.subr.bf16.mxu0 0
    %207 = vmatpush2.bf16.msra.mxu0 0
    %208 = vmatprep.subr.bf16.mxu0 0
    %209 = vmatpush2.bf16.msra.mxu0 0
    %210 = vmatprep.mubr.bf16.mxu0 0
    %211 = vmatmul.mubr.bf16.gmra.mxu0 %v128
    %v212 = vpop.f32.mrf.mxu0
    %v213 = vadd.f32 %v122, %v212
    %v214 = vpop.f32.mrf.mxu0
    %v215 = vpop.f32.mrf.mxu0
    %v216 = vadd.f32 %v122, %v215
    %v217 = vpop.f32.mrf.mxu0
    %218 = vdwg.mxu0
    %v219 = vpack.c.bf16 %v216, %v213
    %v221 = vunpack.c.l.b16 %v219
    %v222 = vunpack.c.h.b16 %v219
    %v223 = vpack.c.b16 %v221, %v221
    %v224 = vpack.c.b16 %v222, %v222
    %227 = vst [vmem:[#allocation11] sm:$0xf] %v223
    %228 = vst [vmem:[#allocation11 + $0x4] sm:$0xf] %v224
    %v229 = vld [vmem:[#allocation8] sm:$0xf]
    %v230 = vld [vmem:[#allocation8 + $0x4] sm:$0xf]
    %v231 = vld [vmem:[#allocation8 + $0x8] sm:$0xf]
    %v232 = vld [vmem:[#allocation8 + $0xc] sm:$0xf]
    %v233 = vld [vmem:[#allocation8 + $0x10] sm:$0xf]
    %v234 = vld [vmem:[#allocation8 + $0x14] sm:$0xf]
    %v235 = vld [vmem:[#allocation8 + $0x18] sm:$0xf]
    %v236 = vld [vmem:[#allocation8 + $0x1c] sm:$0xf]
    %v237 = vld [vmem:[#allocation8 + $0x20] sm:$0xf]
    %v238 = vld [vmem:[#allocation8 + $0x24] sm:$0xf]
    %v239 = vld [vmem:[#allocation8 + $0x28] sm:$0xf]
    %v240 = vld [vmem:[#allocation8 + $0x2c] sm:$0xf]
    %v241 = vld [vmem:[#allocation8 + $0x30] sm:$0xf]
    %v242 = vld [vmem:[#allocation8 + $0x34] sm:$0xf]
    %v243 = vld [vmem:[#allocation8 + $0x38] sm:$0xf]
    %v244 = vld [vmem:[#allocation8 + $0x3c] sm:$0xf]
    %v245 = vld [vmem:[#allocation5] sm:$0xf]
    %v246 = vld [vmem:[#allocation5 + $0x4] sm:$0xf]
    %v247 = vld [vmem:[#allocation10] sm:$0xf]
    %v248 = vld [vmem:[#allocation10 + $0x4] sm:$0xf]
    %v249 = vld [vmem:[#allocation10 + $0x8] sm:$0xf]
    %v250 = vld [vmem:[#allocation10 + $0xc] sm:$0xf]
    %v251 = vld [vmem:[#allocation10 + $0x10] sm:$0xf]
    %v252 = vld [vmem:[#allocation10 + $0x14] sm:$0xf]
    %v253 = vld [vmem:[#allocation10 + $0x18] sm:$0xf]
    %v254 = vld [vmem:[#allocation10 + $0x1c] sm:$0xf]
    %v255 = vld [vmem:[#allocation10 + $0x20] sm:$0xf]
    %v256 = vld [vmem:[#allocation10 + $0x24] sm:$0xf]
    %v257 = vld [vmem:[#allocation10 + $0x28] sm:$0xf]
    %v258 = vld [vmem:[#allocation10 + $0x2c] sm:$0xf]
    %v259 = vld [vmem:[#allocation10 + $0x30] sm:$0xf]
    %v260 = vld [vmem:[#allocation10 + $0x34] sm:$0xf]
    %v261 = vld [vmem:[#allocation10 + $0x38] sm:$0xf]
    %v262 = vld [vmem:[#allocation10 + $0x3c] sm:$0xf]
    %v265 = vunpack.c.l.b16 %v245
    %v266 = vunpack.c.l.b16 %v246
    %v267 = vpack.c.b16 %v266, %v265
    %v285 = vunpack.c.l.b16 %v247
    %v286 = vunpack.c.l.b16 %v248
    %v287 = vunpack.c.l.b16 %v249
    %v288 = vunpack.c.l.b16 %v250
    %v289 = vunpack.c.l.b16 %v251
    %v290 = vunpack.c.l.b16 %v252
    %v291 = vunpack.c.l.b16 %v253
    %v292 = vunpack.c.l.b16 %v254
    %v293 = vunpack.c.l.b16 %v255
    %v294 = vunpack.c.l.b16 %v256
    %v295 = vunpack.c.l.b16 %v257
    %v296 = vunpack.c.l.b16 %v258
    %v297 = vunpack.c.l.b16 %v259
    %v298 = vunpack.c.l.b16 %v260
    %v299 = vunpack.c.l.b16 %v261
    %v300 = vunpack.c.l.b16 %v262
    %v301 = vpack.c.b16 %v286, %v285
    %v302 = vpack.c.b16 %v288, %v287
    %v303 = vpack.c.b16 %v290, %v289
    %v304 = vpack.c.b16 %v292, %v291
    %v305 = vpack.c.b16 %v294, %v293
    %v306 = vpack.c.b16 %v296, %v295
    %v307 = vpack.c.b16 %v298, %v297
    %v308 = vpack.c.b16 %v300, %v299
    %317 = vmatprep.subr.bf16.mxu0 0
    %318 = vmatpush1.bf16.msra.mxu0 %v308
    %319 = vmatprep.subr.bf16.mxu0 0
    %320 = vmatpush1.bf16.msra.mxu0 %v307
    %321 = vmatprep.subr.bf16.mxu0 0
    %322 = vmatpush1.bf16.msra.mxu0 %v306
    %323 = vmatprep.subr.bf16.mxu0 0
    %324 = vmatpush1.bf16.msra.mxu0 %v305
    %325 = vmatprep.subr.bf16.mxu0 0
    %326 = vmatpush1.bf16.msra.mxu0 %v304
    %327 = vmatprep.subr.bf16.mxu0 0
    %328 = vmatpush1.bf16.msra.mxu0 %v303
    %329 = vmatprep.subr.bf16.mxu0 0
    %330 = vmatpush1.bf16.msra.mxu0 %v302
    %331 = vmatprep.subr.bf16.mxu0 0
    %332 = vmatpush1.bf16.msra.mxu0 %v301
    %333 = vmatprep.subr.bf16.mxu0 0
    %334 = vmatpush2.bf16.msra.mxu0 0
    %335 = vmatprep.subr.bf16.mxu0 0
    %336 = vmatpush2.bf16.msra.mxu0 0
    %337 = vmatprep.subr.bf16.mxu0 0
    %338 = vmatpush2.bf16.msra.mxu0 0
    %339 = vmatprep.subr.bf16.mxu0 0
    %340 = vmatpush2.bf16.msra.mxu0 0
    %341 = vmatprep.subr.bf16.mxu0 0
    %342 = vmatpush2.bf16.msra.mxu0 0
    %343 = vmatprep.subr.bf16.mxu0 0
    %344 = vmatpush2.bf16.msra.mxu0 0
    %345 = vmatprep.subr.bf16.mxu0 0
    %346 = vmatpush2.bf16.msra.mxu0 0
    %347 = vmatprep.subr.bf16.mxu0 0
    %348 = vmatpush2.bf16.msra.mxu0 0
    %349 = vmatprep.mubr.bf16.mxu0 0
    %350 = vmatmul.mubr.bf16.gmra.mxu0 %v267
    %v351 = vpop.f32.mrf.mxu0
    %v352 = vadd.f32 0.0, %v351
    %v353 = vpop.f32.mrf.mxu0
    %v354 = vpop.f32.mrf.mxu0
    %v355 = vadd.f32 0.0, %v354
    %v356 = vpop.f32.mrf.mxu0
    %357 = vdwg.mxu0
    %v374 = vunpack.c.l.b16 %v229
    %v375 = vunpack.c.l.b16 %v230
    %v376 = vunpack.c.l.b16 %v231
    %v377 = vunpack.c.l.b16 %v232
    %v378 = vunpack.c.l.b16 %v233
    %v379 = vunpack.c.l.b16 %v234
    %v380 = vunpack.c.l.b16 %v235
    %v381 = vunpack.c.l.b16 %v236
    %v382 = vunpack.c.l.b16 %v237
    %v383 = vunpack.c.l.b16 %v238
    %v384 = vunpack.c.l.b16 %v239
    %v385 = vunpack.c.l.b16 %v240
    %v386 = vunpack.c.l.b16 %v241
    %v387 = vunpack.c.l.b16 %v242
    %v388 = vunpack.c.l.b16 %v243
    %v389 = vunpack.c.l.b16 %v244
    %v390 = vpack.c.b16 %v375, %v374
    %v391 = vpack.c.b16 %v377, %v376
    %v392 = vpack.c.b16 %v379, %v378
    %v393 = vpack.c.b16 %v381, %v380
    %v394 = vpack.c.b16 %v383, %v382
    %v395 = vpack.c.b16 %v385, %v384
    %v396 = vpack.c.b16 %v387, %v386
    %v397 = vpack.c.b16 %v389, %v388
    %406 = vmatprep.subr.bf16.mxu0 0
    %407 = vmatpush1.bf16.msra.mxu0 %v397
    %408 = vmatprep.subr.bf16.mxu0 0
    %409 = vmatpush1.bf16.msra.mxu0 %v396
    %410 = vmatprep.subr.bf16.mxu0 0
    %411 = vmatpush1.bf16.msra.mxu0 %v395
    %412 = vmatprep.subr.bf16.mxu0 0
    %413 = vmatpush1.bf16.msra.mxu0 %v394
    %414 = vmatprep.subr.bf16.mxu0 0
    %415 = vmatpush1.bf16.msra.mxu0 %v393
    %416 = vmatprep.subr.bf16.mxu0 0
    %417 = vmatpush1.bf16.msra.mxu0 %v392
    %418 = vmatprep.subr.bf16.mxu0 0
    %419 = vmatpush1.bf16.msra.mxu0 %v391
    %420 = vmatprep.subr.bf16.mxu0 0
    %421 = vmatpush1.bf16.msra.mxu0 %v390
    %422 = vmatprep.subr.bf16.mxu0 0
    %423 = vmatpush2.bf16.msra.mxu0 0
    %424 = vmatprep.subr.bf16.mxu0 0
    %425 = vmatpush2.bf16.msra.mxu0 0
    %426 = vmatprep.subr.bf16.mxu0 0
    %427 = vmatpush2.bf16.msra.mxu0 0
    %428 = vmatprep.subr.bf16.mxu0 0
    %429 = vmatpush2.bf16.msra.mxu0 0
    %430 = vmatprep.subr.bf16.mxu0 0
    %431 = vmatpush2.bf16.msra.mxu0 0
    %432 = vmatprep.subr.bf16.mxu0 0
    %433 = vmatpush2.bf16.msra.mxu0 0
    %434 = vmatprep.subr.bf16.mxu0 0
    %435 = vmatpush2.bf16.msra.mxu0 0
    %436 = vmatprep.subr.bf16.mxu0 0
    %437 = vmatpush2.bf16.msra.mxu0 0
    %438 = vmatprep.mubr.bf16.mxu0 0
    %439 = vmatmul.mubr.bf16.gmra.mxu0 %v219
    %v440 = vpop.f32.mrf.mxu0
    %v441 = vadd.f32 %v352, %v440
    %v442 = vpop.f32.mrf.mxu0
    %v443 = vpop.f32.mrf.mxu0
    %v444 = vadd.f32 %v355, %v443
    %v445 = vpop.f32.mrf.mxu0
    %446 = vdwg.mxu0
    %v447 = vld [vmem:[%s6] sm:$0x1]
    %v449 = vlaneseq
    %v450 = vshrl.u32 %v449, 7
    %v451 = vsub.s32 0, %v450
    %v452 = vrot.slane %v447, %v451
    %v454 = vadd.f32 %v441, %v452
    %v455 = vadd.f32 %v444, %v452
    %v456 = vpack.c.bf16 %v455, %v454
    %v458 = vunpack.c.l.b16 %v456
    %v459 = vunpack.c.h.b16 %v456
    %v460 = vpack.c.b16 %v458, %v458
    %v461 = vpack.c.b16 %v459, %v459
    %464 = vst [vmem:[#allocation12] sm:$0xf] %v460
    %465 = vst [vmem:[#allocation12 + $0x4] sm:$0xf] %v461
    // Predicated region
    $region50: #{tpu_custom_call.1} parent=1 // pred_check
      _
    $region51: #{tpu_custom_call.1} parent=1 // pred_check_branch
      %467 = sbr.rel (0) target = $region53
    $region52: #{tpu_custom_call.1} parent=1 // pred_region
      %s469 = ssub.s32 128, 128
      %470 = vsyncadd [#allocation4], %s469
      %s471 = sshll.u32 [#allocation11], 4
      %s472 = int_to_ptr.vmem [resolvable:$true] %s471
      %477 = dma.vmem_to_hbm [thread:$0]  %s472, 128, %s7, [#allocation4], 64, 64, 4
    $region53: #{tpu_custom_call.1} parent=1 // pred_fallthru
      _
    // Predicated region
    $region54: #{tpu_custom_call.1} parent=1 // pred_check
      _
    $region55: #{tpu_custom_call.1} parent=1 // pred_check_branch
      %479 = sbr.rel (0) target = $region57
    $region56: #{tpu_custom_call.1} parent=1 // pred_region
      %s481 = ssub.s32 128, 128
      %482 = vsyncadd [#allocation13], %s481
      %s483 = sshll.u32 [#allocation12], 4
      %s484 = int_to_ptr.vmem [resolvable:$true] %s483
      %489 = dma.vmem_to_hbm [thread:$0]  %s484, 128, %s8, [#allocation13], 64, 64, 4
    $region57: #{tpu_custom_call.1} parent=1 // pred_fallthru
      _
    // Predicated region
    $region58: #{tpu_custom_call.1} parent=1 // pred_check
      _
    $region59: #{tpu_custom_call.1} parent=1 // pred_check_branch
      %491 = sbr.rel (0) target = $region61
    $region60: #{tpu_custom_call.1} parent=1 // pred_region
      %492 = dma.done [#allocation4], 128
    $region61: #{tpu_custom_call.1} parent=1 // pred_fallthru
      _
    // Predicated region
    $region62: #{tpu_custom_call.1} parent=1 // pred_check
      _
    $region63: #{tpu_custom_call.1} parent=1 // pred_check_branch
      %494 = sbr.rel (0) target = $region65
    $region64: #{tpu_custom_call.1} parent=1 // pred_region
      %495 = dma.done [#allocation13], 128
    $region65: #{tpu_custom_call.1} parent=1 // pred_fallthru
      _
    %496 = vsyncpa [#allocation3], 1
    %497 = vsyncpa [#allocation6], 1
    %498 = vsyncpa [#allocation9], 1
    %499 = vsyncpa [#allocation4], 1
    %500 = vsyncpa [#allocation13], 1

// kernel: tpu_custom_call.1
$region0: #{tpu_custom_call.1}
  #allocation0 [shape = 'u32[]', space=smem, size = 0x4, offset = 0x4, fixed_abs, tag = 'smem constant byte address 0x4 - core index']
  #allocation1 [shape = 'u32[144,128]{1,0:T(1,128)}', space=vmem, size = 0x12000, scoped, tag = 'internal scratch']
  %s0 = inlined_call_operand.hbm [shape: bf16[16,128], index: 0, kind: input, shape index: {}]
  %s1 = inlined_call_operand.hbm [shape: bf16[16,128], index: 1, kind: input, shape index: {}]
  %s2 = inlined_call_operand.hbm [shape: bf16[128,128], index: 2, kind: input, shape index: {}]
  %s3 = inlined_call_operand.vmem [shape: f32[1,128], index: 3, kind: input, shape index: {}]
  %s4 = inlined_call_operand.hbm [shape: bf16[128,128], index: 4, kind: input, shape index: {}]
  %s5 = inlined_call_operand.hbm [shape: bf16[128,128], index: 5, kind: input, shape index: {}]
  %s6 = inlined_call_operand.vmem [shape: f32[1,128], index: 6, kind: input, shape index: {}]
  %s7 = inlined_call_operand.hbm [shape: bf16[16,128], index: 7, kind: output, shape index: {0}]
  %s8 = inlined_call_operand.hbm [shape: bf16[16,128], index: 8, kind: output, shape index: {1}]
  %9 = xla_tuple %s7, %s8
  %s10 = sld [smem:[#allocation0]]
  $region66: #{tpu_custom_call.1} parent=0
    _
  %s12 = ssub.s32 1, %s10
  %s13 = scalar_select 0, %s12, %s10
  $region1: #{tpu_custom_call.1} parent=0
    #allocation2 [shape = 'u8[4096]{0}', space=vmem, size = 0x1000, scoped, tag = 'input window, operand 0, single buffered']
    #allocation3 [shape = 's32[1]{0}', space=sflag, size = 0x4, scoped, tag = 'scoped memory for tpu_custom_call.1']
    #allocation4 [shape = 's32[1]{0}', space=sflag, size = 0x4, scoped, tag = 'scoped memory for tpu_custom_call.1']
    #allocation5 [shape = 'u8[4096]{0}', space=vmem, size = 0x1000, scoped, tag = 'input window, operand 1, single buffered']
    #allocation6 [shape = 's32[1]{0}', space=sflag, size = 0x4, scoped, tag = 'scoped memory for tpu_custom_call.1']
    #allocation7 [shape = 'u8[32768]{0}', space=vmem, size = 0x8000, scoped, tag = 'input window, operand 2, single buffered']
    #allocation8 [shape = 'u8[32768]{0}', space=vmem, size = 0x8000, scoped, tag = 'input window, operand 4, single buffered']
    #allocation9 [shape = 's32[1]{0}', space=sflag, size = 0x4, scoped, tag = 'scoped memory for tpu_custom_call.1']
    #allocation10 [shape = 'u8[32768]{0}', space=vmem, size = 0x8000, scoped, tag = 'input window, operand 5, single buffered']
    #allocation11 [shape = 'u8[4096]{0}', space=vmem, size = 0x1000, scoped, tag = 'output window, operand 0, single buffered']
    #allocation12 [shape = 'u8[4096]{0}', space=vmem, size = 0x1000, scoped, tag = 'output window, operand 1, single buffered']
    #allocation13 [shape = 's32[1]{0}', space=sflag, size = 0x4, scoped, tag = 'scoped memory for tpu_custom_call.1']
    %14 = vsyncpa [#allocation3], 0
    %15 = vsyncpa [#allocation6], 0
    %16 = vsyncpa [#allocation9], 0
    %17 = vsyncpa [#allocation4], 0
    %18 = vsyncpa [#allocation13], 0
    // Predicated region
    $region2: #{tpu_custom_call.1} parent=1 // pred_check
      _
    $region3: #{tpu_custom_call.1} parent=1 // pred_check_branch
      %20 = sbr.rel (0) target = $region5
    $region4: #{tpu_custom_call.1} parent=1 // pred_region
      %s22 = ssub.s32 128, 128
      %23 = vsyncadd [#allocation3], %s22
      %s24 = sshll.u32 [#allocation2], 4
      %s25 = int_to_ptr.vmem [resolvable:$true] %s24
      %30 = dma.hbm_to_vmem [thread:$0]  %s0, 128, %s25, [#allocation3], 64, 64, 4
    $region5: #{tpu_custom_call.1} parent=1 // pred_fallthru
      _
    // Predicated region
    $region6: #{tpu_custom_call.1} parent=1 // pred_check
      _
    $region7: #{tpu_custom_call.1} parent=1 // pred_check_branch
      %32 = sbr.rel (0) target = $region9
    $region8: #{tpu_custom_call.1} parent=1 // pred_region
      %s34 = ssub.s32 128, 128
      %35 = vsyncadd [#allocation6], %s34
      %s36 = sshll.u32 [#allocation5], 4
      %s37 = int_to_ptr.vmem [resolvable:$true] %s36
      %42 = dma.hbm_to_vmem [thread:$0]  %s1, 128, %s37, [#allocation6], 64, 64, 4
    $region9: #{tpu_custom_call.1} parent=1 // pred_fallthru
      _
    // Predicated region
    $region10: #{tpu_custom_call.1} parent=1 // pred_check
      _
    $region11: #{tpu_custom_call.1} parent=1 // pred_check_branch
      %44 = sbr.rel (0) target = $region13
    $region12: #{tpu_custom_call.1} parent=1 // pred_region
      %s46 = ssub.s32 1024, 1024
      %47 = vsyncadd [#allocation6], %s46
      %s48 = sshll.u32 [#allocation7], 4
      %s49 = int_to_ptr.vmem [resolvable:$true] %s48
      %54 = dma.hbm_to_vmem [thread:$0]  %s2, 1024, %s49, [#allocation6], 64, 64, 4
    $region13: #{tpu_custom_call.1} parent=1 // pred_fallthru
      _
    // Predicated region
    $region14: #{tpu_custom_call.1} parent=1 // pred_check
      _
    $region15: #{tpu_custom_call.1} parent=1 // pred_check_branch
      %56 = sbr.rel (0) target = $region17
    $region16: #{tpu_custom_call.1} parent=1 // pred_region
      _
    $region17: #{tpu_custom_call.1} parent=1 // pred_fallthru
      _
    // Predicated region
    $region18: #{tpu_custom_call.1} parent=1 // pred_check
      _
    $region19: #{tpu_custom_call.1} parent=1 // pred_check_branch
      %58 = sbr.rel (0) target = $region21
    $region20: #{tpu_custom_call.1} parent=1 // pred_region
      %s60 = ssub.s32 1024, 1024
      %61 = vsyncadd [#allocation9], %s60
      %s62 = sshll.u32 [#allocation8], 4
      %s63 = int_to_ptr.vmem [resolvable:$true] %s62
      %68 = dma.hbm_to_vmem [thread:$0]  %s4, 1024, %s63, [#allocation9], 64, 64, 4
    $region21: #{tpu_custom_call.1} parent=1 // pred_fallthru
      _
    // Predicated region
    $region22: #{tpu_custom_call.1} parent=1 // pred_check
      _
    $region23: #{tpu_custom_call.1} parent=1 // pred_check_branch
      %70 = sbr.rel (0) target = $region25
    $region24: #{tpu_custom_call.1} parent=1 // pred_region
      %s72 = ssub.s32 1024, 1024
      %73 = vsyncadd [#allocation9], %s72
      %s74 = sshll.u32 [#allocation10], 4
      %s75 = int_to_ptr.vmem [resolvable:$true] %s74
      %80 = dma.hbm_to_vmem [thread:$0]  %s5, 1024, %s75, [#allocation9], 64, 64, 4
    $region25: #{tpu_custom_call.1} parent=1 // pred_fallthru
      _
    // Predicated region
    $region26: #{tpu_custom_call.1} parent=1 // pred_check
      _
    $region27: #{tpu_custom_call.1} parent=1 // pred_check_branch
      %82 = sbr.rel (0) target = $region29
    $region28: #{tpu_custom_call.1} parent=1 // pred_region
      _
    $region29: #{tpu_custom_call.1} parent=1 // pred_fallthru
      _
    // Predicated region
    $region30: #{tpu_custom_call.1} parent=1 // pred_check
      _
    $region31: #{tpu_custom_call.1} parent=1 // pred_check_branch
      %84 = sbr.rel (0) target = $region33
    $region32: #{tpu_custom_call.1} parent=1 // pred_region
      %85 = dma.done [#allocation3], 128
    $region33: #{tpu_custom_call.1} parent=1 // pred_fallthru
      _
    // Predicated region
    $region34: #{tpu_custom_call.1} parent=1 // pred_check
      _
    $region35: #{tpu_custom_call.1} parent=1 // pred_check_branch
      %87 = sbr.rel (0) target = $region37
    $region36: #{tpu_custom_call.1} parent=1 // pred_region
      %88 = dma.done [#allocation6], 128
    $region37: #{tpu_custom_call.1} parent=1 // pred_fallthru
      _
    // Predicated region
    $region38: #{tpu_custom_call.1} parent=1 // pred_check
      _
    $region39: #{tpu_custom_call.1} parent=1 // pred_check_branch
      %90 = sbr.rel (0) target = $region41
    $region40: #{tpu_custom_call.1} parent=1 // pred_region
      %91 = dma.done [#allocation6], 1024
    $region41: #{tpu_custom_call.1} parent=1 // pred_fallthru
      _
    // Predicated region
    $region42: #{tpu_custom_call.1} parent=1 // pred_check
      _
    $region43: #{tpu_custom_call.1} parent=1 // pred_check_branch
      %93 = sbr.rel (0) target = $region45
    $region44: #{tpu_custom_call.1} parent=1 // pred_region
      %94 = dma.done [#allocation9], 1024
    $region45: #{tpu_custom_call.1} parent=1 // pred_fallthru
      _
    // Predicated region
    $region46: #{tpu_custom_call.1} parent=1 // pred_check
      _
    $region47: #{tpu_custom_call.1} parent=1 // pred_check_branch
      %96 = sbr.rel (0) target = $region49
    $region48: #{tpu_custom_call.1} parent=1 // pred_region
      %97 = dma.done [#allocation9], 1024
    $region49: #{tpu_custom_call.1} parent=1 // pred_fallthru
      _
    %v99 = vld [vmem:[#allocation2] sm:$0xf]
    %v100 = vld [vmem:[#allocation2 + $0x4] sm:$0xf]
    %v101 = vld [vmem:[#allocation7] sm:$0xf]
    %v102 = vld [vmem:[#allocation7 + $0x4] sm:$0xf]
    %v103 = vld [vmem:[#allocation7 + $0x8] sm:$0xf]
    %v104 = vld [vmem:[#allocation7 + $0xc] sm:$0xf]
    %v105 = vld [vmem:[#allocation7 + $0x10] sm:$0xf]
    %v106 = vld [vmem:[#allocation7 + $0x14] sm:$0xf]
    %v107 = vld [vmem:[#allocation7 + $0x18] sm:$0xf]
    %v108 = vld [vmem:[#allocation7 + $0x1c] sm:$0xf]
    %v109 = vld [vmem:[#allocation7 + $0x20] sm:$0xf]
    %v110 = vld [vmem:[#allocation7 + $0x24] sm:$0xf]
    %v111 = vld [vmem:[#allocation7 + $0x28] sm:$0xf]
    %v112 = vld [vmem:[#allocation7 + $0x2c] sm:$0xf]
    %v113 = vld [vmem:[#allocation7 + $0x30] sm:$0xf]
    %v114 = vld [vmem:[#allocation7 + $0x34] sm:$0xf]
    %v115 = vld [vmem:[#allocation7 + $0x38] sm:$0xf]
    %v116 = vld [vmem:[#allocation7 + $0x3c] sm:$0xf]
    %v117 = vld [vmem:[%s3] sm:$0x1]
    %v119 = vlaneseq
    %v120 = vshrl.u32 %v119, 7
    %v121 = vsub.s32 0, %v120
    %v122 = vrot.slane %v117, %v121
    %v126 = vunpack.c.l.b16 %v99
    %v127 = vunpack.c.l.b16 %v100
    %v128 = vpack.c.b16 %v127, %v126
    %v146 = vunpack.c.l.b16 %v101
    %v147 = vunpack.c.l.b16 %v102
    %v148 = vunpack.c.l.b16 %v103
    %v149 = vunpack.c.l.b16 %v104
    %v150 = vunpack.c.l.b16 %v105
    %v151 = vunpack.c.l.b16 %v106
    %v152 = vunpack.c.l.b16 %v107
    %v153 = vunpack.c.l.b16 %v108
    %v154 = vunpack.c.l.b16 %v109
    %v155 = vunpack.c.l.b16 %v110
    %v156 = vunpack.c.l.b16 %v111
    %v157 = vunpack.c.l.b16 %v112
    %v158 = vunpack.c.l.b16 %v113
    %v159 = vunpack.c.l.b16 %v114
    %v160 = vunpack.c.l.b16 %v115
    %v161 = vunpack.c.l.b16 %v116
    %v162 = vpack.c.b16 %v147, %v146
    %v163 = vpack.c.b16 %v149, %v148
    %v164 = vpack.c.b16 %v151, %v150
    %v165 = vpack.c.b16 %v153, %v152
    %v166 = vpack.c.b16 %v155, %v154
    %v167 = vpack.c.b16 %v157, %v156
    %v168 = vpack.c.b16 %v159, %v158
    %v169 = vpack.c.b16 %v161, %v160
    %178 = vmatprep.subr.bf16.mxu0 0
    %179 = vmatpush1.bf16.msra.mxu0 %v169
    %180 = vmatprep.subr.bf16.mxu0 0
    %181 = vmatpush1.bf16.msra.mxu0 %v168
    %182 = vmatprep.subr.bf16.mxu0 0
    %183 = vmatpush1.bf16.msra.mxu0 %v167
    %184 = vmatprep.subr.bf16.mxu0 0
    %185 = vmatpush1.bf16.msra.mxu0 %v166
    %186 = vmatprep.subr.bf16.mxu0 0
    %187 = vmatpush1.bf16.msra.mxu0 %v165
    %188 = vmatprep.subr.bf16.mxu0 0
    %189 = vmatpush1.bf16.msra.mxu0 %v164
    %190 = vmatprep.subr.bf16.mxu0 0
    %191 = vmatpush1.bf16.msra.mxu0 %v163
    %192 = vmatprep.subr.bf16.mxu0 0
    %193 = vmatpush1.bf16.msra.mxu0 %v162
    %194 = vmatprep.subr.bf16.mxu0 0
    %195 = vmatpush2.bf16.msra.mxu0 0
    %196 = vmatprep.subr.bf16.mxu0 0
    %197 = vmatpush2.bf16.msra.mxu0 0
    %198 = vmatprep.subr.bf16.mxu0 0
    %199 = vmatpush2.bf16.msra.mxu0 0
    %200 = vmatprep.subr.bf16.mxu0 0
    %201 = vmatpush2.bf16.msra.mxu0 0
    %202 = vmatprep.subr.bf16.mxu0 0
    %203 = vmatpush2.bf16.msra.mxu0 0
    %204 = vmatprep.subr.bf16.mxu0 0
    %205 = vmatpush2.bf16.msra.mxu0 0
    %206 = vmatprep.subr.bf16.mxu0 0
    %207 = vmatpush2.bf16.msra.mxu0 0
    %208 = vmatprep.subr.bf16.mxu0 0
    %209 = vmatpush2.bf16.msra.mxu0 0
    %210 = vmatprep.mubr.bf16.mxu0 0
    %211 = vmatmul.mubr.bf16.gmra.mxu0 %v128
    %v212 = vpop.f32.mrf.mxu0
    %v213 = vadd.f32 %v122, %v212
    %v214 = vpop.f32.mrf.mxu0
    %v215 = vpop.f32.mrf.mxu0
    %v216 = vadd.f32 %v122, %v215
    %v217 = vpop.f32.mrf.mxu0
    %218 = vdwg.mxu0
    %v219 = vpack.c.bf16 %v216, %v213
    %v221 = vunpack.c.l.b16 %v219
    %v222 = vunpack.c.h.b16 %v219
    %v223 = vpack.c.b16 %v221, %v221
    %v224 = vpack.c.b16 %v222, %v222
    %227 = vst [vmem:[#allocation11] sm:$0xf] %v223
    %228 = vst [vmem:[#allocation11 + $0x4] sm:$0xf] %v224
    %v229 = vld [vmem:[#allocation8] sm:$0xf]
    %v230 = vld [vmem:[#allocation8 + $0x4] sm:$0xf]
    %v231 = vld [vmem:[#allocation8 + $0x8] sm:$0xf]
    %v232 = vld [vmem:[#allocation8 + $0xc] sm:$0xf]
    %v233 = vld [vmem:[#allocation8 + $0x10] sm:$0xf]
    %v234 = vld [vmem:[#allocation8 + $0x14] sm:$0xf]
    %v235 = vld [vmem:[#allocation8 + $0x18] sm:$0xf]
    %v236 = vld [vmem:[#allocation8 + $0x1c] sm:$0xf]
    %v237 = vld [vmem:[#allocation8 + $0x20] sm:$0xf]
    %v238 = vld [vmem:[#allocation8 + $0x24] sm:$0xf]
    %v239 = vld [vmem:[#allocation8 + $0x28] sm:$0xf]
    %v240 = vld [vmem:[#allocation8 + $0x2c] sm:$0xf]
    %v241 = vld [vmem:[#allocation8 + $0x30] sm:$0xf]
    %v242 = vld [vmem:[#allocation8 + $0x34] sm:$0xf]
    %v243 = vld [vmem:[#allocation8 + $0x38] sm:$0xf]
    %v244 = vld [vmem:[#allocation8 + $0x3c] sm:$0xf]
    %v245 = vld [vmem:[#allocation5] sm:$0xf]
    %v246 = vld [vmem:[#allocation5 + $0x4] sm:$0xf]
    %v247 = vld [vmem:[#allocation10] sm:$0xf]
    %v248 = vld [vmem:[#allocation10 + $0x4] sm:$0xf]
    %v249 = vld [vmem:[#allocation10 + $0x8] sm:$0xf]
    %v250 = vld [vmem:[#allocation10 + $0xc] sm:$0xf]
    %v251 = vld [vmem:[#allocation10 + $0x10] sm:$0xf]
    %v252 = vld [vmem:[#allocation10 + $0x14] sm:$0xf]
    %v253 = vld [vmem:[#allocation10 + $0x18] sm:$0xf]
    %v254 = vld [vmem:[#allocation10 + $0x1c] sm:$0xf]
    %v255 = vld [vmem:[#allocation10 + $0x20] sm:$0xf]
    %v256 = vld [vmem:[#allocation10 + $0x24] sm:$0xf]
    %v257 = vld [vmem:[#allocation10 + $0x28] sm:$0xf]
    %v258 = vld [vmem:[#allocation10 + $0x2c] sm:$0xf]
    %v259 = vld [vmem:[#allocation10 + $0x30] sm:$0xf]
    %v260 = vld [vmem:[#allocation10 + $0x34] sm:$0xf]
    %v261 = vld [vmem:[#allocation10 + $0x38] sm:$0xf]
    %v262 = vld [vmem:[#allocation10 + $0x3c] sm:$0xf]
    %v265 = vunpack.c.l.b16 %v245
    %v266 = vunpack.c.l.b16 %v246
    %v267 = vpack.c.b16 %v266, %v265
    %v285 = vunpack.c.l.b16 %v247
    %v286 = vunpack.c.l.b16 %v248
    %v287 = vunpack.c.l.b16 %v249
    %v288 = vunpack.c.l.b16 %v250
    %v289 = vunpack.c.l.b16 %v251
    %v290 = vunpack.c.l.b16 %v252
    %v291 = vunpack.c.l.b16 %v253
    %v292 = vunpack.c.l.b16 %v254
    %v293 = vunpack.c.l.b16 %v255
    %v294 = vunpack.c.l.b16 %v256
    %v295 = vunpack.c.l.b16 %v257
    %v296 = vunpack.c.l.b16 %v258
    %v297 = vunpack.c.l.b16 %v259
    %v298 = vunpack.c.l.b16 %v260
    %v299 = vunpack.c.l.b16 %v261
    %v300 = vunpack.c.l.b16 %v262
    %v301 = vpack.c.b16 %v286, %v285
    %v302 = vpack.c.b16 %v288, %v287
    %v303 = vpack.c.b16 %v290, %v289
    %v304 = vpack.c.b16 %v292, %v291
    %v305 = vpack.c.b16 %v294, %v293
    %v306 = vpack.c.b16 %v296, %v295
    %v307 = vpack.c.b16 %v298, %v297
    %v308 = vpack.c.b16 %v300, %v299
    %317 = vmatprep.subr.bf16.mxu0 0
    %318 = vmatpush1.bf16.msra.mxu0 %v308
    %319 = vmatprep.subr.bf16.mxu0 0
    %320 = vmatpush1.bf16.msra.mxu0 %v307
    %321 = vmatprep.subr.bf16.mxu0 0
    %322 = vmatpush1.bf16.msra.mxu0 %v306
    %323 = vmatprep.subr.bf16.mxu0 0
    %324 = vmatpush1.bf16.msra.mxu0 %v305
    %325 = vmatprep.subr.bf16.mxu0 0
    %326 = vmatpush1.bf16.msra.mxu0 %v304
    %327 = vmatprep.subr.bf16.mxu0 0
    %328 = vmatpush1.bf16.msra.mxu0 %v303
    %329 = vmatprep.subr.bf16.mxu0 0
    %330 = vmatpush1.bf16.msra.mxu0 %v302
    %331 = vmatprep.subr.bf16.mxu0 0
    %332 = vmatpush1.bf16.msra.mxu0 %v301
    %333 = vmatprep.subr.bf16.mxu0 0
    %334 = vmatpush2.bf16.msra.mxu0 0
    %335 = vmatprep.subr.bf16.mxu0 0
    %336 = vmatpush2.bf16.msra.mxu0 0
    %337 = vmatprep.subr.bf16.mxu0 0
    %338 = vmatpush2.bf16.msra.mxu0 0
    %339 = vmatprep.subr.bf16.mxu0 0
    %340 = vmatpush2.bf16.msra.mxu0 0
    %341 = vmatprep.subr.bf16.mxu0 0
    %342 = vmatpush2.bf16.msra.mxu0 0
    %343 = vmatprep.subr.bf16.mxu0 0
    %344 = vmatpush2.bf16.msra.mxu0 0
    %345 = vmatprep.subr.bf16.mxu0 0
    %346 = vmatpush2.bf16.msra.mxu0 0
    %347 = vmatprep.subr.bf16.mxu0 0
    %348 = vmatpush2.bf16.msra.mxu0 0
    %349 = vmatprep.mubr.bf16.mxu0 0
    %350 = vmatmul.mubr.bf16.gmra.mxu0 %v267
    %v351 = vpop.f32.mrf.mxu0
    %v352 = vadd.f32 0.0, %v351
    %v353 = vpop.f32.mrf.mxu0
    %v354 = vpop.f32.mrf.mxu0
    %v355 = vadd.f32 0.0, %v354
    %v356 = vpop.f32.mrf.mxu0
    %357 = vdwg.mxu0
    %v374 = vunpack.c.l.b16 %v229
    %v375 = vunpack.c.l.b16 %v230
    %v376 = vunpack.c.l.b16 %v231
    %v377 = vunpack.c.l.b16 %v232
    %v378 = vunpack.c.l.b16 %v233
    %v379 = vunpack.c.l.b16 %v234
    %v380 = vunpack.c.l.b16 %v235
    %v381 = vunpack.c.l.b16 %v236
    %v382 = vunpack.c.l.b16 %v237
    %v383 = vunpack.c.l.b16 %v238
    %v384 = vunpack.c.l.b16 %v239
    %v385 = vunpack.c.l.b16 %v240
    %v386 = vunpack.c.l.b16 %v241
    %v387 = vunpack.c.l.b16 %v242
    %v388 = vunpack.c.l.b16 %v243
    %v389 = vunpack.c.l.b16 %v244
    %v390 = vpack.c.b16 %v375, %v374
    %v391 = vpack.c.b16 %v377, %v376
    %v392 = vpack.c.b16 %v379, %v378
    %v393 = vpack.c.b16 %v381, %v380
    %v394 = vpack.c.b16 %v383, %v382
    %v395 = vpack.c.b16 %v385, %v384
    %v396 = vpack.c.b16 %v387, %v386
    %v397 = vpack.c.b16 %v389, %v388
    %406 = vmatprep.subr.bf16.mxu0 0
    %407 = vmatpush1.bf16.msra.mxu0 %v397
    %408 = vmatprep.subr.bf16.mxu0 0
    %409 = vmatpush1.bf16.msra.mxu0 %v396
    %410 = vmatprep.subr.bf16.mxu0 0
    %411 = vmatpush1.bf16.msra.mxu0 %v395
    %412 = vmatprep.subr.bf16.mxu0 0
    %413 = vmatpush1.bf16.msra.mxu0 %v394
    %414 = vmatprep.subr.bf16.mxu0 0
    %415 = vmatpush1.bf16.msra.mxu0 %v393
    %416 = vmatprep.subr.bf16.mxu0 0
    %417 = vmatpush1.bf16.msra.mxu0 %v392
    %418 = vmatprep.subr.bf16.mxu0 0
    %419 = vmatpush1.bf16.msra.mxu0 %v391
    %420 = vmatprep.subr.bf16.mxu0 0
    %421 = vmatpush1.bf16.msra.mxu0 %v390
    %422 = vmatprep.subr.bf16.mxu0 0
    %423 = vmatpush2.bf16.msra.mxu0 0
    %424 = vmatprep.subr.bf16.mxu0 0
    %425 = vmatpush2.bf16.msra.mxu0 0
    %426 = vmatprep.subr.bf16.mxu0 0
    %427 = vmatpush2.bf16.msra.mxu0 0
    %428 = vmatprep.subr.bf16.mxu0 0
    %429 = vmatpush2.bf16.msra.mxu0 0
    %430 = vmatprep.subr.bf16.mxu0 0
    %431 = vmatpush2.bf16.msra.mxu0 0
    %432 = vmatprep.subr.bf16.mxu0 0
    %433 = vmatpush2.bf16.msra.mxu0 0
    %434 = vmatprep.subr.bf16.mxu0 0
    %435 = vmatpush2.bf16.msra.mxu0 0
    %436 = vmatprep.subr.bf16.mxu0 0
    %437 = vmatpush2.bf16.msra.mxu0 0
    %438 = vmatprep.mubr.bf16.mxu0 0
    %439 = vmatmul.mubr.bf16.gmra.mxu0 %v219
    %v440 = vpop.f32.mrf.mxu0
    %v441 = vadd.f32 %v352, %v440
    %v442 = vpop.f32.mrf.mxu0
    %v443 = vpop.f32.mrf.mxu0
    %v444 = vadd.f32 %v355, %v443
    %v445 = vpop.f32.mrf.mxu0
    %446 = vdwg.mxu0
    %v447 = vld [vmem:[%s6] sm:$0x1]
    %v449 = vlaneseq
    %v450 = vshrl.u32 %v449, 7
    %v451 = vsub.s32 0, %v450
    %v452 = vrot.slane %v447, %v451
    %v454 = vadd.f32 %v441, %v452
    %v455 = vadd.f32 %v444, %v452
    %v456 = vpack.c.bf16 %v455, %v454
    %v458 = vunpack.c.l.b16 %v456
    %v459 = vunpack.c.h.b16 %v456
    %v460 = vpack.c.b16 %v458, %v458
    %v461 = vpack.c.b16 %v459, %v459
    %464 = vst [vmem:[#allocation12] sm:$0xf] %v460
    %465 = vst [vmem:[#allocation12 + $0x4] sm:$0xf] %v461
    // Predicated region
    $region50: #{tpu_custom_call.1} parent=1 // pred_check
      _
    $region51: #{tpu_custom_call.1} parent=1 // pred_check_branch
      %467 = sbr.rel (0) target = $region53
    $region52: #{tpu_custom_call.1} parent=1 // pred_region
      %s469 = ssub.s32 128, 128
      %470 = vsyncadd [#allocation4], %s469
      %s471 = sshll.u32 [#allocation11], 4
      %s472 = int_to_ptr.vmem [resolvable:$true] %s471
      %477 = dma.vmem_to_hbm [thread:$0]  %s472, 128, %s7, [#allocation4], 64, 64, 4
    $region53: #{tpu_custom_call.1} parent=1 // pred_fallthru
      _
    // Predicated region
    $region54: #{tpu_custom_call.1} parent=1 // pred_check
      _
    $region55: #{tpu_custom_call.1} parent=1 // pred_check_branch
      %479 = sbr.rel (0) target = $region57
    $region56: #{tpu_custom_call.1} parent=1 // pred_region
      %s481 = ssub.s32 128, 128
      %482 = vsyncadd [#allocation13], %s481
      %s483 = sshll.u32 [#allocation12], 4
      %s484 = int_to_ptr.vmem [resolvable:$true] %s483
      %489 = dma.vmem_to_hbm [thread:$0]  %s484, 128, %s8, [#allocation13], 64, 64, 4
    $region57: #{tpu_custom_call.1} parent=1 // pred_fallthru
      _
    // Predicated region
    $region58: #{tpu_custom_call.1} parent=1 // pred_check
      _
    $region59: #{tpu_custom_call.1} parent=1 // pred_check_branch
      %491 = sbr.rel (0) target = $region61
    $region60: #{tpu_custom_call.1} parent=1 // pred_region
      %492 = dma.done [#allocation4], 128
    $region61: #{tpu_custom_call.1} parent=1 // pred_fallthru
      _
    // Predicated region
    $region62: #{tpu_custom_call.1} parent=1 // pred_check
      _
    $region63: #{tpu_custom_call.1} parent=1 // pred_check_branch
      %494 = sbr.rel (0) target = $region65
    $region64: #{tpu_custom_call.1} parent=1 // pred_region
      %495 = dma.done [#allocation13], 128
    $region65: #{tpu_custom_call.1} parent=1 // pred_fallthru
      _
    %496 = vsyncpa [#allocation3], 1
    %497 = vsyncpa [#allocation6], 1
    %498 = vsyncpa [#allocation9], 1
    %499 = vsyncpa [#allocation4], 1
    %500 = vsyncpa [#allocation13], 1

</llo_original>
